<compile_context>
chip_gen: v7x
topology: tpu7x:2x2x1
jax: 0.10.0
libtpu: 0.0.40
codegen_flags: <defaults>
</compile_context>

<pallas_src>
import jax
import jax.numpy as jnp
from jax.experimental import pallas as pl
from jax.experimental.pallas import tpu as pltpu


# Sublane multiple per element size (sub-32-bit dtypes pack along sublanes).
_SUBLANE = {4: 8, 2: 16, 1: 32}


def _silu_kernel(x_ref, o_ref):
    x = x_ref[...]
    # Native-dtype compute: bf16 stays bf16 on v6e/v7x (VPU/EUP are bf16
    # native); Mosaic widens internally where the chip requires it.
    o_ref[...] = (x * jax.nn.sigmoid(x)).astype(o_ref.dtype)


def _chip_config():
    """Returns (block_bytes, vmem_limit_bytes) tuned per TPU generation."""
    try:
        vmem_cap = int(pltpu.get_tpu_info().vmem_capacity_bytes)
    except Exception:
        vmem_cap = 0
    mib = 1024 * 1024
    if 0 < vmem_cap <= 80 * mib:
        # v7x: 64 MiB VMEM/TC, ~3.2 TB/s HBM. Big blocks amortize the fixed
        # per-step cost; 4 double-buffered 8 MiB blocks (32 MiB) + scratch
        # need the scoped-VMEM limit raised.
        return 8 * mib, 48 * mib
    if vmem_cap > 80 * mib:
        # v5e / v6e (128 MiB VMEM): ~4 MiB blocks sit at ~86% of the HBM
        # roofline; explicit 32 MiB limit covers v5e's 16 MiB default.
        return 4 * mib, 32 * mib
    # Unknown chip / query failed: conservative defaults.
    return 2 * mib, None


def hswish(x: jax.Array, *, block_bytes: int | None = None,
           bypass_bytes: int = 1 << 20, force_pallas: bool = False) -> jax.Array:
    """Elementwise x * sigmoid(x), matching the torch module's forward."""
    orig_shape = x.shape
    dtype = x.dtype
    n = x.size
    itemsize = jnp.dtype(dtype).itemsize

    # Small-input bypass: dispatch + pipeline warm-up dominates tiny tensors,
    # and plain XLA lets the op fuse into neighbouring elementwise work.
    if not force_pallas and n * itemsize <= bypass_bytes:
        return x * jax.nn.sigmoid(x)

    cfg_block, vmem_limit = _chip_config()
    if block_bytes is None:
        block_bytes = cfg_block

    sublane = _SUBLANE.get(itemsize, 8)

    # Widest lane dimension (multiple of 128) that divides n exactly, so the
    # flattened tensor reshapes into a lane-dense (rows, lanes) slab for free.
    lanes = 128
    for cand in (8192, 4096, 2048, 1024, 512, 256, 128):
        if n % cand == 0:
            lanes = cand
            break

    x_flat = x.reshape(-1)
    n_main = (n // lanes) * lanes
    if n_main == 0:
        # Fewer than 128 elements: not worth a kernel at all.
        return x * jax.nn.sigmoid(x)

    rows = n_main // lanes

    # Rows per block: ~block_bytes, rounded to the dtype sublane multiple.
    tile_rows = max(sublane, (block_bytes // (lanes * itemsize)) // sublane * sublane)
    if rows > sublane:
        # Guarantee >= 2 grid steps so v7x's two TensorCores both get work
        # (harmless extra step on single-TC v5e/v6e).
        half = (pl.cdiv(rows, 2) + sublane - 1) // sublane * sublane
        tile_rows = min(tile_rows, half)
    tile_rows = min(tile_rows, rows)   # rows == full array dim -> always legal

    grid = (pl.cdiv(rows, tile_rows),)  # ragged last block is masked by Pallas

    main = x_flat[:n_main].reshape(rows, lanes)

    out_main = pl.pallas_call(
        _silu_kernel,
        out_shape=jax.ShapeDtypeStruct((rows, lanes), dtype),
        grid_spec=pltpu.PrefetchScalarGridSpec(
            num_scalar_prefetch=0,
            grid=grid,
            in_specs=[pl.BlockSpec((tile_rows, lanes), lambda i: (i, 0))],
            out_specs=pl.BlockSpec((tile_rows, lanes), lambda i: (i, 0)),
        ),
        compiler_params=pltpu.CompilerParams(
            dimension_semantics=("parallel",),
            vmem_limit_bytes=vmem_limit,
        ),
        cost_estimate=pl.CostEstimate(
            flops=5 * n_main,
            transcendentals=n_main,
            bytes_accessed=2 * n_main * itemsize,
        ),
    )(main)

    out_flat = out_main.reshape(-1)
    if n_main < n:
        # Rare: element count not a multiple of 128. Compute the tiny tail
        # (< lanes elements) in plain jnp instead of padding the whole tensor.
        tail = x_flat[n_main:]
        out_flat = jnp.concatenate([out_flat, tail * jax.nn.sigmoid(tail)])
    return out_flat.reshape(orig_shape)


def _reference(x):
    return x * jax.nn.sigmoid(x)


if __name__ == "__main__":
    k0, k1, k2 = jax.random.split(jax.random.PRNGKey(0), 3)

    # Small NCHW input consistent with the module's ImageNet usage; forced
    # through the Pallas path so the kernel itself is exercised.
    x = jax.random.normal(k0, (2, 4, 16, 16), dtype=jnp.float32)
    y = jax.block_until_ready(hswish(x, force_pallas=True))
    y_ref = _reference(x)
    assert y.shape == x.shape and y.dtype == x.dtype
    assert jnp.allclose(y, y_ref, atol=1e-5, rtol=1e-5), "mismatch (small, pallas)"

    # Default path (small-input bypass) must agree too.
    y_bypass = jax.block_until_ready(hswish(x))
    assert jnp.allclose(y_bypass, y_ref, atol=1e-5, rtol=1e-5), "mismatch (bypass)"

    # Larger activation -> multi-step 1-D parallel grid (two-TC path on v7x).
    xm = jax.random.normal(k1, (4, 32, 64, 64), dtype=jnp.float32)
    ym = jax.block_until_ready(hswish(xm))
    assert jnp.allclose(ym, _reference(xm), atol=1e-5, rtol=1e-5), "mismatch (medium)"

    # Element count not divisible by 128 -> aligned-prefix kernel + jnp tail.
    xr = jax.random.normal(k2, (3, 5, 7, 11), dtype=jnp.float32)
    yr = jax.block_until_ready(hswish(xr, force_pallas=True))
    assert jnp.allclose(yr, _reference(xr), atol=1e-5, rtol=1e-5), "mismatch (ragged)"

    # bf16: native-dtype compute, 16-row sublane alignment.
    xb = xm.astype(jnp.bfloat16)
    yb = jax.block_until_ready(hswish(xb))
    assert yb.dtype == jnp.bfloat16
    assert jnp.allclose(yb.astype(jnp.float32),
                        _reference(xb).astype(jnp.float32),
                        atol=2e-2, rtol=2e-2), "mismatch (bf16)"

    print("KERNEL_OK")
</pallas_src>

<mosaic_0001>
module attributes {stable_mosaic.version = 11 : i64} {
  func.func @_silu_kernel(%arg0: i32, %arg1: memref<1x2048xf32, #tpu.memory_space<vmem>>, %arg2: memref<1x2048xf32, #tpu.memory_space<vmem>>) attributes {dimension_semantics = [#tpu.dimension_semantics<parallel>], iteration_bounds = array<i64: 1>, scalar_prefetch = 0 : i64, scratch_operands = 0 : i64, tpu.core_type = #tpu.core_type<tc>, window_params = [{transform_indices = @transform_0, window_bounds = array<i64: 1, 2048>}, {transform_indices = @transform_1, window_bounds = array<i64: 1, 2048>}]} {
    %c0 = arith.constant 0 : index
    %c0_0 = arith.constant 0 : index
    %0 = vector.load %arg1[%c0, %c0_0] : memref<1x2048xf32, #tpu.memory_space<vmem>>, vector<1x2048xf32>
    %1 = arith.negf %0 : vector<1x2048xf32>
    %2 = math.exp %1 : vector<1x2048xf32>
    %cst = arith.constant 1.000000e+00 : f32
    %3 = vector.broadcast %cst : f32 to vector<1x2048xf32>
    %4 = arith.addf %3, %2 : vector<1x2048xf32>
    %5 = arith.divf %3, %4 : vector<1x2048xf32>
    %6 = arith.mulf %0, %5 : vector<1x2048xf32>
    %c0_1 = arith.constant 0 : index
    %c0_2 = arith.constant 0 : index
    %7 = vector.load %arg2[%c0_1, %c0_2] : memref<1x2048xf32, #tpu.memory_space<vmem>>, vector<1x2048xf32>
    tpu.vector_store %arg2[%c0_1, %c0_2], %6 {strides = array<i32>} : memref<1x2048xf32, #tpu.memory_space<vmem>>, vector<1x2048xf32>,
    return
  }
  func.func @transform_0(%arg0: i32) -> (i32, i32) {
    %c0_i32 = arith.constant 0 : i32
    %c0_i32_0 = arith.constant 0 : i32
    return %arg0, %c0_i32 : i32, i32
  }
  func.func @transform_1(%arg0: i32) -> (i32, i32) {
    %c0_i32 = arith.constant 0 : i32
    %c0_i32_0 = arith.constant 0 : i32
    return %arg0, %c0_i32 : i32, i32
  }
}

</mosaic_0001>

<llo_original>
// kernel: tpu_custom_call.1
$region0: #{tpu_custom_call.1}
  #allocation0 [shape = 'u32[]', space=smem, size = 0x4, offset = 0x4, fixed_abs, tag = 'smem constant byte address 0x4 - core index']
  #allocation1 [shape = 'u32[144,128]{1,0:T(1,128)}', space=vmem, size = 0x12000, scoped, tag = 'internal scratch']
  %s0 = inlined_call_operand.hbm [shape: f32[1,2048], index: 0, kind: input, shape index: {}]
  %s1 = inlined_call_operand.hbm [shape: f32[1,2048], index: 1, kind: output, shape index: {}]
  %s2 = sld [smem:[#allocation0]]
  $region18: #{tpu_custom_call.1} parent=0
    _
  %s4 = ssub.s32 1, %s2
  %s5 = scalar_select 0, %s4, %s2
  $region1: #{tpu_custom_call.1} parent=0
    #allocation2 [shape = 'u8[8192]{0}', space=vmem, size = 0x2000, scoped, tag = 'input window, operand 0, single buffered']
    #allocation3 [shape = 's32[1]{0}', space=sflag, size = 0x4, scoped, tag = 'scoped memory for tpu_custom_call.1']
    #allocation4 [shape = 's32[1]{0}', space=sflag, size = 0x4, scoped, tag = 'scoped memory for tpu_custom_call.1']
    #allocation5 [shape = 'u8[8192]{0}', space=vmem, size = 0x2000, scoped, tag = 'output window, operand 0, single buffered']
    %6 = vsyncpa [#allocation3], 0
    %7 = vsyncpa [#allocation4], 0
    // Predicated region
    $region2: #{tpu_custom_call.1} parent=1 // pred_check
      _
    $region3: #{tpu_custom_call.1} parent=1 // pred_check_branch
      %9 = sbr.rel (0) target = $region5
    $region4: #{tpu_custom_call.1} parent=1 // pred_region
      %s11 = ssub.s32 256, 256
      %12 = vsyncadd [#allocation3], %s11
      %s14 = sshll.u32 [#allocation2], 4
      %s15 = int_to_ptr.vmem [resolvable:$true] %s14
      %17 = dma.hbm_to_vmem [thread:$0]  %s0, 256, %s15, [#allocation3]
    $region5: #{tpu_custom_call.1} parent=1 // pred_fallthru
      _
    // Predicated region
    $region6: #{tpu_custom_call.1} parent=1 // pred_check
      _
    $region7: #{tpu_custom_call.1} parent=1 // pred_check_branch
      %19 = sbr.rel (0) target = $region9
    $region8: #{tpu_custom_call.1} parent=1 // pred_region
      %20 = dma.done [#allocation3], 256
    $region9: #{tpu_custom_call.1} parent=1 // pred_fallthru
      _
    %v21 = vld [vmem:[#allocation2] sm:$0xff]
    %v22 = vld [vmem:[#allocation2 + $0x8] sm:$0xff]
    %v23 = vxor.u32 %v21, 2147483648
    %v24 = vxor.u32 %v22, 2147483648
    %v25 = vmul.f32 %v23, 1.442695
    %v26 = vpow.pop %v25
    %v27 = vmul.f32 %v24, 1.442695
    %v28 = vpow.pop %v27
    %v29 = vadd.f32 %v26, 1.0
    %v30 = vadd.f32 %v28, 1.0
    %v31 = vrcp.pop %v29
    %v32 = vmul.f32 1.0, %v31
    %v33 = vrcp.pop %v30
    %v34 = vmul.f32 1.0, %v33
    %v35 = vmul.f32 %v21, %v32
    %v36 = vmul.f32 %v22, %v34
    %37 = vst [vmem:[#allocation5] sm:$0xff] %v35
    %38 = vst [vmem:[#allocation5 + $0x8] sm:$0xff] %v36
    // Predicated region
    $region10: #{tpu_custom_call.1} parent=1 // pred_check
      _
    $region11: #{tpu_custom_call.1} parent=1 // pred_check_branch
      %40 = sbr.rel (0) target = $region13
    $region12: #{tpu_custom_call.1} parent=1 // pred_region
      %s42 = ssub.s32 256, 256
      %43 = vsyncadd [#allocation4], %s42
      %s45 = sshll.u32 [#allocation5], 4
      %s46 = int_to_ptr.vmem [resolvable:$true] %s45
      %48 = dma.vmem_to_hbm [thread:$0]  %s46, 256, %s1, [#allocation4]
    $region13: #{tpu_custom_call.1} parent=1 // pred_fallthru
      _
    // Predicated region
    $region14: #{tpu_custom_call.1} parent=1 // pred_check
      _
    $region15: #{tpu_custom_call.1} parent=1 // pred_check_branch
      %50 = sbr.rel (0) target = $region17
    $region16: #{tpu_custom_call.1} parent=1 // pred_region
      %51 = dma.done [#allocation4], 256
    $region17: #{tpu_custom_call.1} parent=1 // pred_fallthru
      _
    %52 = vsyncpa [#allocation3], 1
    %53 = vsyncpa [#allocation4], 1

</llo_original>
